<compile_context>
chip_gen: v7x
topology: tpu7x:2x2x1
jax: 0.10.0
libtpu: 0.0.40
codegen_flags: <defaults>
</compile_context>

<pallas_src>
import math

import jax
import jax.numpy as jnp
from jax.experimental import pallas as pl
from jax.experimental.pallas import tpu as pltpu


# ----------------------------- fused Pallas kernel ---------------------------

def _make_lstm_kernel(h_num, seq_len):
    """Build a fused multi-layer LSTM kernel body.

    Ref order (positional):
      xw0_ref                          (1, n, 4*dh0)   precomputed inp[t] @ Wx0 + b0
      layer 0   weights: Wh0, Wq0, bq0
      layer i>0 weights: Wx_i, Wh_i, b_i, Wq_i, bq_i
      y_ref                            (n, out_d)      final-timestep output
      scratch:  H0, C0, H1, C1, ...    (n, dh_i)       persistent recurrent state
    """
    n_w = 3 + 5 * (h_num - 1)

    def kernel(*refs):
        xw0_ref = refs[0]
        w_refs = refs[1:1 + n_w]
        y_ref = refs[1 + n_w]
        scratch = refs[2 + n_w:]
        t = pl.program_id(0)

        # Zero the recurrent state once, at the first timestep.
        @pl.when(t == 0)
        def _init():
            for s in scratch:
                s[...] = jnp.zeros_like(s)

        X = None
        w_idx = 0
        for i in range(h_num):
            h_sc = scratch[2 * i]
            c_sc = scratch[2 * i + 1]
            H = h_sc[...]
            C = c_sc[...]
            dh = H.shape[1]

            if i == 0:
                wh_ref, wq_ref, bq_ref = w_refs[w_idx:w_idx + 3]
                w_idx += 3
                # Input projection (and bias) hoisted out of the recurrence.
                Z = xw0_ref[0] + jnp.dot(H, wh_ref[...],
                                         preferred_element_type=jnp.float32)
            else:
                wx_ref, wh_ref, b_ref, wq_ref, bq_ref = w_refs[w_idx:w_idx + 5]
                w_idx += 5
                Z = (jnp.dot(X, wx_ref[...], preferred_element_type=jnp.float32)
                     + jnp.dot(H, wh_ref[...], preferred_element_type=jnp.float32)
                     + b_ref[...])

            # Gate order in the concatenated weight layout: [i | f | o | c]
            I = jax.nn.sigmoid(Z[:, 0 * dh:1 * dh])
            F = jax.nn.sigmoid(Z[:, 1 * dh:2 * dh])
            O = jax.nn.sigmoid(Z[:, 2 * dh:3 * dh])
            C_tilda = jnp.tanh(Z[:, 3 * dh:4 * dh])

            C_new = F * C + I * C_tilda
            H_new = O * jnp.tanh(C_new)

            h_sc[...] = C_new * 0.0 + H_new if False else H_new  # plain store
            c_sc[...] = C_new

            if i < h_num - 1:
                # Intermediate layers feed their projection to the next layer.
                X = (jnp.dot(H_new, wq_ref[...], preferred_element_type=jnp.float32)
                     + bq_ref[...])
            else:
                # Only the last timestep's Y of the last layer is returned.
                @pl.when(t == seq_len - 1)
                def _final(H_new=H_new, wq_ref=wq_ref, bq_ref=bq_ref):
                    y_ref[...] = (jnp.dot(H_new, wq_ref[...],
                                          preferred_element_type=jnp.float32)
                                  + bq_ref[...])

    return kernel


def lstm_forward_pallas(inp, params):
    """inp: (seq_len, n, in_d); returns Y of the last timestep, shape (n, out_d)."""
    seq_len, n, in_d = inp.shape
    h_num = len(params)
    out_d = params[-1]["Wq"].shape[1]

    # Hoist the time-parallel layer-0 input projection out of the recurrence:
    # one big (seq_len*n, in_d) @ (in_d, 4*dh0) matmul instead of seq_len tiny ones.
    p0 = params[0]
    xw0 = jnp.einsum("tni,ij->tnj", inp, p0["Wx"]) + p0["b"][None]  # (T, n, 4*dh0)

    flat_args = [xw0]
    in_specs = [pl.BlockSpec((1, n, xw0.shape[-1]), lambda t: (t, 0, 0))]

    def resident_spec(a):
        # Full-array block, constant index -> DMA'd into VMEM once, stays resident.
        return pl.BlockSpec(a.shape, lambda t: (0, 0))

    for name in ("Wh", "Wq", "bq"):               # layer 0 resident weights
        a = p0[name]
        flat_args.append(a)
        in_specs.append(resident_spec(a))
    for p in params[1:]:                          # deeper layers
        for name in ("Wx", "Wh", "b", "Wq", "bq"):
            a = p[name]
            flat_args.append(a)
            in_specs.append(resident_spec(a))

    scratch_shapes = []
    for p in params:
        dh = p["Wh"].shape[0]
        scratch_shapes.append(pltpu.VMEM((n, dh), jnp.float32))  # H_i
        scratch_shapes.append(pltpu.VMEM((n, dh), jnp.float32))  # C_i

    kernel = _make_lstm_kernel(h_num, seq_len)

    return pl.pallas_call(
        kernel,
        out_shape=jax.ShapeDtypeStruct((n, out_d), jnp.float32),
        grid_spec=pltpu.PrefetchScalarGridSpec(
            num_scalar_prefetch=0,
            grid=(seq_len,),
            in_specs=in_specs,
            out_specs=pl.BlockSpec((n, out_d), lambda t: (0, 0)),
            scratch_shapes=scratch_shapes,
        ),
        compiler_params=pltpu.CompilerParams(
            dimension_semantics=("arbitrary",),    # time is a serial recurrence
            vmem_limit_bytes=64 << 20,
        ),
    )(*flat_args)


# ------------------------- parameter initialization --------------------------

def xavier_uniform(key, shape):
    fan_in, fan_out = shape
    bound = math.sqrt(6.0 / (fan_in + fan_out))
    return jax.random.uniform(key, shape, jnp.float32, -bound, bound)


def build_params(key, in_d, out_d, hidden_sizes):
    """Mirrors LSTM.__init__ parameter shapes (deterministic synthetic init)."""
    h_list = [in_d] + list(hidden_sizes) + [out_d]
    h_num = len(hidden_sizes)
    params = []
    for i in range(h_num):
        d_in, d_h = h_list[i], h_list[i + 1]
        d_q = d_h if i < h_num - 1 else h_list[i + 2]
        keys = jax.random.split(key, 11)
        key = keys[0]
        W_xi = xavier_uniform(keys[1], (d_in, d_h))
        W_xf = xavier_uniform(keys[2], (d_in, d_h))
        W_xo = xavier_uniform(keys[3], (d_in, d_h))
        W_xc = xavier_uniform(keys[4], (d_in, d_h))
        W_hi = xavier_uniform(keys[5], (d_h, d_h))
        W_hf = xavier_uniform(keys[6], (d_h, d_h))
        W_ho = xavier_uniform(keys[7], (d_h, d_h))
        W_hc = xavier_uniform(keys[8], (d_h, d_h))
        b = jnp.zeros((1, 4 * d_h), jnp.float32)   # b_i, b_f, b_o, b_c (zeros)
        W_q = jax.random.normal(keys[9], (d_h, d_q), jnp.float32)
        b_q = jax.random.normal(keys[10], (1, d_q), jnp.float32)
        params.append(dict(
            Wx=jnp.concatenate([W_xi, W_xf, W_xo, W_xc], axis=1),
            Wh=jnp.concatenate([W_hi, W_hf, W_ho, W_hc], axis=1),
            b=b, Wq=W_q, bq=b_q,
        ))
    return params


# ----------------------------- pure-JAX reference ----------------------------

def lstm_forward_ref(inp, params):
    """Pure-JAX reference matching the PyTorch forward semantics."""
    seq_len, n, _ = inp.shape
    h_num = len(params)
    H = [jnp.zeros((n, p["Wh"].shape[0]), jnp.float32) for p in params]
    C = [jnp.zeros((n, p["Wh"].shape[0]), jnp.float32) for p in params]
    Y = None
    for t in range(seq_len):
        X = inp[t]
        for i in range(h_num):
            p = params[i]
            dh = p["Wh"].shape[0]
            Z = X @ p["Wx"] + H[i] @ p["Wh"] + p["b"]
            Ig = jax.nn.sigmoid(Z[:, 0 * dh:1 * dh])
            Fg = jax.nn.sigmoid(Z[:, 1 * dh:2 * dh])
            Og = jax.nn.sigmoid(Z[:, 2 * dh:3 * dh])
            Ct = jnp.tanh(Z[:, 3 * dh:4 * dh])
            C[i] = Fg * C[i] + Ig * Ct
            H[i] = Og * jnp.tanh(C[i])
            Y = H[i] @ p["Wq"] + p["bq"]
            if i < h_num - 1:
                X = Y
    return Y


# ----------------------------------- main ------------------------------------

if __name__ == "__main__":
    # Small shapes: seq=8, batch n=8, in_d=16, hidden layers [32, 32], out_d=8
    seq_len, n, in_d, out_d = 8, 8, 16, 8
    hidden_sizes = [32, 32]

    key = jax.random.PRNGKey(0)
    k_inp, k_par = jax.random.split(key)
    inp = jax.random.normal(k_inp, (seq_len, n, in_d), jnp.float32)
    params = build_params(k_par, in_d, out_d, hidden_sizes)

    Y = lstm_forward_pallas(inp, params)
    Y = jax.block_until_ready(Y)

    Y_ref = lstm_forward_ref(inp, params)
    assert Y.shape == (n, out_d)
    assert jnp.allclose(Y, Y_ref, atol=1e-4, rtol=1e-4), "Pallas kernel mismatch vs reference"

    # TODO(synk): backward()/Adam optimizer/NaN-fixup utilities in the PyTorch module are
    # training-only and are not part of the forward pass translated here.
    print("KERNEL_OK")
</pallas_src>

<mosaic_0001>
module attributes {stable_mosaic.version = 11 : i64} {
  func.func @kernel(%arg0: i32, %arg1: memref<1x8x128xf32, #tpu.memory_space<vmem>>, %arg2: memref<32x128xf32, #tpu.memory_space<vmem>>, %arg3: memref<32x32xf32, #tpu.memory_space<vmem>>, %arg4: memref<1x32xf32, #tpu.memory_space<vmem>>, %arg5: memref<32x128xf32, #tpu.memory_space<vmem>>, %arg6: memref<32x128xf32, #tpu.memory_space<vmem>>, %arg7: memref<1x128xf32, #tpu.memory_space<vmem>>, %arg8: memref<32x8xf32, #tpu.memory_space<vmem>>, %arg9: memref<1x8xf32, #tpu.memory_space<vmem>>, %arg10: memref<8x8xf32, #tpu.memory_space<vmem>>, %arg11: memref<8x32xf32, #tpu.memory_space<vmem>>, %arg12: memref<8x32xf32, #tpu.memory_space<vmem>>, %arg13: memref<8x32xf32, #tpu.memory_space<vmem>>, %arg14: memref<8x32xf32, #tpu.memory_space<vmem>>) attributes {dimension_semantics = [#tpu.dimension_semantics<arbitrary>], iteration_bounds = array<i64: 8>, scalar_prefetch = 0 : i64, scratch_operands = 4 : i64, tpu.core_type = #tpu.core_type<tc>, window_params = [{transform_indices = @transform_0, window_bounds = array<i64: 1, 8, 128>}, {pipeline_mode = #tpu.pipeline_mode<synchronous>, transform_indices = @transform_1, window_bounds = array<i64: 32, 128>}, {pipeline_mode = #tpu.pipeline_mode<synchronous>, transform_indices = @transform_2, window_bounds = array<i64: 32, 32>}, {pipeline_mode = #tpu.pipeline_mode<synchronous>, transform_indices = @transform_3, window_bounds = array<i64: 1, 32>}, {pipeline_mode = #tpu.pipeline_mode<synchronous>, transform_indices = @transform_4, window_bounds = array<i64: 32, 128>}, {pipeline_mode = #tpu.pipeline_mode<synchronous>, transform_indices = @transform_5, window_bounds = array<i64: 32, 128>}, {pipeline_mode = #tpu.pipeline_mode<synchronous>, transform_indices = @transform_6, window_bounds = array<i64: 1, 128>}, {pipeline_mode = #tpu.pipeline_mode<synchronous>, transform_indices = @transform_7, window_bounds = array<i64: 32, 8>}, {pipeline_mode = #tpu.pipeline_mode<synchronous>, transform_indices = @transform_8, window_bounds = array<i64: 1, 8>}, {pipeline_mode = #tpu.pipeline_mode<synchronous>, transform_indices = @transform_9, window_bounds = array<i64: 8, 8>}]} {
    %c0_i32 = arith.constant 0 : i32
    %0 = arith.cmpi eq, %arg0, %c0_i32 : i32
    %1 = arith.extui %0 : i1 to i32
    %c0_i32_0 = arith.constant 0 : i32
    %2 = arith.cmpi ne, %1, %c0_i32_0 : i32
    scf.if %2 {
      %cst_41 = arith.constant 0.000000e+00 : f32
      %82 = vector.broadcast %cst_41 : f32 to vector<8x32xf32>
      %c0_42 = arith.constant 0 : index
      %c0_43 = arith.constant 0 : index
      %83 = vector.load %arg11[%c0_42, %c0_43] : memref<8x32xf32, #tpu.memory_space<vmem>>, vector<8x32xf32>
      tpu.vector_store %arg11[%c0_42, %c0_43], %82 {strides = array<i32>} : memref<8x32xf32, #tpu.memory_space<vmem>>, vector<8x32xf32>,
      %cst_44 = arith.constant 0.000000e+00 : f32
      %84 = vector.broadcast %cst_44 : f32 to vector<8x32xf32>
      %c0_45 = arith.constant 0 : index
      %c0_46 = arith.constant 0 : index
      %85 = vector.load %arg12[%c0_45, %c0_46] : memref<8x32xf32, #tpu.memory_space<vmem>>, vector<8x32xf32>
      tpu.vector_store %arg12[%c0_45, %c0_46], %84 {strides = array<i32>} : memref<8x32xf32, #tpu.memory_space<vmem>>, vector<8x32xf32>,
      %cst_47 = arith.constant 0.000000e+00 : f32
      %86 = vector.broadcast %cst_47 : f32 to vector<8x32xf32>
      %c0_48 = arith.constant 0 : index
      %c0_49 = arith.constant 0 : index
      %87 = vector.load %arg13[%c0_48, %c0_49] : memref<8x32xf32, #tpu.memory_space<vmem>>, vector<8x32xf32>
      tpu.vector_store %arg13[%c0_48, %c0_49], %86 {strides = array<i32>} : memref<8x32xf32, #tpu.memory_space<vmem>>, vector<8x32xf32>,
      %cst_50 = arith.constant 0.000000e+00 : f32
      %88 = vector.broadcast %cst_50 : f32 to vector<8x32xf32>
      %c0_51 = arith.constant 0 : index
      %c0_52 = arith.constant 0 : index
      %89 = vector.load %arg14[%c0_51, %c0_52] : memref<8x32xf32, #tpu.memory_space<vmem>>, vector<8x32xf32>
      tpu.vector_store %arg14[%c0_51, %c0_52], %88 {strides = array<i32>} : memref<8x32xf32, #tpu.memory_space<vmem>>, vector<8x32xf32>,
    } else {
    }
    %c0 = arith.constant 0 : index
    %c0_1 = arith.constant 0 : index
    %3 = vector.load %arg11[%c0, %c0_1] : memref<8x32xf32, #tpu.memory_space<vmem>>, vector<8x32xf32>
    %c0_2 = arith.constant 0 : index
    %c0_3 = arith.constant 0 : index
    %4 = vector.load %arg12[%c0_2, %c0_3] : memref<8x32xf32, #tpu.memory_space<vmem>>, vector<8x32xf32>
    %c0_4 = arith.constant 0 : index
    %c0_5 = arith.constant 0 : index
    %c0_6 = arith.constant 0 : index
    %5 = vector.load %arg1[%c0_4, %c0_5, %c0_6] : memref<1x8x128xf32, #tpu.memory_space<vmem>>, vector<1x8x128xf32>
    %6 = vector.shape_cast %5 : vector<1x8x128xf32> to vector<8x128xf32>
    %c0_7 = arith.constant 0 : index
    %c0_8 = arith.constant 0 : index
    %7 = vector.load %arg2[%c0_7, %c0_8] : memref<32x128xf32, #tpu.memory_space<vmem>>, vector<32x128xf32>
    %cst = arith.constant dense<0.000000e+00> : vector<8x128xf32>
    %8 = tpu.matmul %3, %7, %cst {dimension_numbers = #tpu.dot_dimension_numbers<[1], [0], [0], [1], [0, 0, 1, 1], [], []>} : vector<8x32xf32>, vector<32x128xf32>, vector<8x128xf32> -> vector<8x128xf32>
    %9 = arith.addf %6, %8 : vector<8x128xf32>
    %10 = vector.extract_strided_slice %9 {offsets = [0, 0], sizes = [8, 32], strides = [1, 1]} : vector<8x128xf32> to vector<8x32xf32>
    %11 = arith.negf %10 : vector<8x32xf32>
    %12 = math.exp %11 : vector<8x32xf32>
    %cst_9 = arith.constant 1.000000e+00 : f32
    %13 = vector.broadcast %cst_9 : f32 to vector<8x32xf32>
    %14 = arith.addf %13, %12 : vector<8x32xf32>
    %15 = arith.divf %13, %14 : vector<8x32xf32>
    %16 = vector.extract_strided_slice %9 {offsets = [0, 32], sizes = [8, 32], strides = [1, 1]} : vector<8x128xf32> to vector<8x32xf32>
    %17 = arith.negf %16 : vector<8x32xf32>
    %18 = math.exp %17 : vector<8x32xf32>
    %cst_10 = arith.constant 1.000000e+00 : f32
    %19 = vector.broadcast %cst_10 : f32 to vector<8x32xf32>
    %20 = arith.addf %19, %18 : vector<8x32xf32>
    %21 = arith.divf %19, %20 : vector<8x32xf32>
    %22 = vector.extract_strided_slice %9 {offsets = [0, 64], sizes = [8, 32], strides = [1, 1]} : vector<8x128xf32> to vector<8x32xf32>
    %23 = arith.negf %22 : vector<8x32xf32>
    %24 = math.exp %23 : vector<8x32xf32>
    %cst_11 = arith.constant 1.000000e+00 : f32
    %25 = vector.broadcast %cst_11 : f32 to vector<8x32xf32>
    %26 = arith.addf %25, %24 : vector<8x32xf32>
    %27 = arith.divf %25, %26 : vector<8x32xf32>
    %28 = vector.extract_strided_slice %9 {offsets = [0, 96], sizes = [8, 32], strides = [1, 1]} : vector<8x128xf32> to vector<8x32xf32>
    %29 = math.tanh %28 : vector<8x32xf32>
    %30 = arith.mulf %21, %4 : vector<8x32xf32>
    %31 = arith.mulf %15, %29 : vector<8x32xf32>
    %32 = arith.addf %30, %31 : vector<8x32xf32>
    %33 = math.tanh %32 : vector<8x32xf32>
    %34 = arith.mulf %27, %33 : vector<8x32xf32>
    %c0_12 = arith.constant 0 : index
    %c0_13 = arith.constant 0 : index
    %35 = vector.load %arg11[%c0_12, %c0_13] : memref<8x32xf32, #tpu.memory_space<vmem>>, vector<8x32xf32>
    tpu.vector_store %arg11[%c0_12, %c0_13], %34 {strides = array<i32>} : memref<8x32xf32, #tpu.memory_space<vmem>>, vector<8x32xf32>,
    %c0_14 = arith.constant 0 : index
    %c0_15 = arith.constant 0 : index
    %36 = vector.load %arg12[%c0_14, %c0_15] : memref<8x32xf32, #tpu.memory_space<vmem>>, vector<8x32xf32>
    tpu.vector_store %arg12[%c0_14, %c0_15], %32 {strides = array<i32>} : memref<8x32xf32, #tpu.memory_space<vmem>>, vector<8x32xf32>,
    %c0_16 = arith.constant 0 : index
    %c0_17 = arith.constant 0 : index
    %37 = vector.load %arg3[%c0_16, %c0_17] : memref<32x32xf32, #tpu.memory_space<vmem>>, vector<32x32xf32>
    %cst_18 = arith.constant dense<0.000000e+00> : vector<8x32xf32>
    %38 = tpu.matmul %34, %37, %cst_18 {dimension_numbers = #tpu.dot_dimension_numbers<[1], [0], [0], [1], [0, 0, 1, 1], [], []>} : vector<8x32xf32>, vector<32x32xf32>, vector<8x32xf32> -> vector<8x32xf32>
    %c0_19 = arith.constant 0 : index
    %c0_20 = arith.constant 0 : index
    %39 = vector.load %arg4[%c0_19, %c0_20] : memref<1x32xf32, #tpu.memory_space<vmem>>, vector<1x32xf32>
    %40 = vector.broadcast %39 : vector<1x32xf32> to vector<8x32xf32>
    %41 = arith.addf %38, %40 : vector<8x32xf32>
    %c0_21 = arith.constant 0 : index
    %c0_22 = arith.constant 0 : index
    %42 = vector.load %arg13[%c0_21, %c0_22] : memref<8x32xf32, #tpu.memory_space<vmem>>, vector<8x32xf32>
    %c0_23 = arith.constant 0 : index
    %c0_24 = arith.constant 0 : index
    %43 = vector.load %arg14[%c0_23, %c0_24] : memref<8x32xf32, #tpu.memory_space<vmem>>, vector<8x32xf32>
    %c0_25 = arith.constant 0 : index
    %c0_26 = arith.constant 0 : index
    %44 = vector.load %arg5[%c0_25, %c0_26] : memref<32x128xf32, #tpu.memory_space<vmem>>, vector<32x128xf32>
    %cst_27 = arith.constant dense<0.000000e+00> : vector<8x128xf32>
    %45 = tpu.matmul %41, %44, %cst_27 {dimension_numbers = #tpu.dot_dimension_numbers<[1], [0], [0], [1], [0, 0, 1, 1], [], []>} : vector<8x32xf32>, vector<32x128xf32>, vector<8x128xf32> -> vector<8x128xf32>
    %c0_28 = arith.constant 0 : index
    %c0_29 = arith.constant 0 : index
    %46 = vector.load %arg6[%c0_28, %c0_29] : memref<32x128xf32, #tpu.memory_space<vmem>>, vector<32x128xf32>
    %cst_30 = arith.constant dense<0.000000e+00> : vector<8x128xf32>
    %47 = tpu.matmul %42, %46, %cst_30 {dimension_numbers = #tpu.dot_dimension_numbers<[1], [0], [0], [1], [0, 0, 1, 1], [], []>} : vector<8x32xf32>, vector<32x128xf32>, vector<8x128xf32> -> vector<8x128xf32>
    %48 = arith.addf %45, %47 : vector<8x128xf32>
    %c0_31 = arith.constant 0 : index
    %c0_32 = arith.constant 0 : index
    %49 = vector.load %arg7[%c0_31, %c0_32] : memref<1x128xf32, #tpu.memory_space<vmem>>, vector<1x128xf32>
    %50 = vector.broadcast %49 : vector<1x128xf32> to vector<8x128xf32>
    %51 = arith.addf %48, %50 : vector<8x128xf32>
    %52 = vector.extract_strided_slice %51 {offsets = [0, 0], sizes = [8, 32], strides = [1, 1]} : vector<8x128xf32> to vector<8x32xf32>
    %53 = arith.negf %52 : vector<8x32xf32>
    %54 = math.exp %53 : vector<8x32xf32>
    %cst_33 = arith.constant 1.000000e+00 : f32
    %55 = vector.broadcast %cst_33 : f32 to vector<8x32xf32>
    %56 = arith.addf %55, %54 : vector<8x32xf32>
    %57 = arith.divf %55, %56 : vector<8x32xf32>
    %58 = vector.extract_strided_slice %51 {offsets = [0, 32], sizes = [8, 32], strides = [1, 1]} : vector<8x128xf32> to vector<8x32xf32>
    %59 = arith.negf %58 : vector<8x32xf32>
    %60 = math.exp %59 : vector<8x32xf32>
    %cst_34 = arith.constant 1.000000e+00 : f32
    %61 = vector.broadcast %cst_34 : f32 to vector<8x32xf32>
    %62 = arith.addf %61, %60 : vector<8x32xf32>
    %63 = arith.divf %61, %62 : vector<8x32xf32>
    %64 = vector.extract_strided_slice %51 {offsets = [0, 64], sizes = [8, 32], strides = [1, 1]} : vector<8x128xf32> to vector<8x32xf32>
    %65 = arith.negf %64 : vector<8x32xf32>
    %66 = math.exp %65 : vector<8x32xf32>
    %cst_35 = arith.constant 1.000000e+00 : f32
    %67 = vector.broadcast %cst_35 : f32 to vector<8x32xf32>
    %68 = arith.addf %67, %66 : vector<8x32xf32>
    %69 = arith.divf %67, %68 : vector<8x32xf32>
    %70 = vector.extract_strided_slice %51 {offsets = [0, 96], sizes = [8, 32], strides = [1, 1]} : vector<8x128xf32> to vector<8x32xf32>
    %71 = math.tanh %70 : vector<8x32xf32>
    %72 = arith.mulf %63, %43 : vector<8x32xf32>
    %73 = arith.mulf %57, %71 : vector<8x32xf32>
    %74 = arith.addf %72, %73 : vector<8x32xf32>
    %75 = math.tanh %74 : vector<8x32xf32>
    %76 = arith.mulf %69, %75 : vector<8x32xf32>
    %c0_36 = arith.constant 0 : index
    %c0_37 = arith.constant 0 : index
    %77 = vector.load %arg13[%c0_36, %c0_37] : memref<8x32xf32, #tpu.memory_space<vmem>>, vector<8x32xf32>
    tpu.vector_store %arg13[%c0_36, %c0_37], %76 {strides = array<i32>} : memref<8x32xf32, #tpu.memory_space<vmem>>, vector<8x32xf32>,
    %c0_38 = arith.constant 0 : index
    %c0_39 = arith.constant 0 : index
    %78 = vector.load %arg14[%c0_38, %c0_39] : memref<8x32xf32, #tpu.memory_space<vmem>>, vector<8x32xf32>
    tpu.vector_store %arg14[%c0_38, %c0_39], %74 {strides = array<i32>} : memref<8x32xf32, #tpu.memory_space<vmem>>, vector<8x32xf32>,
    %c7_i32 = arith.constant 7 : i32
    %79 = arith.cmpi eq, %arg0, %c7_i32 : i32
    %80 = arith.extui %79 : i1 to i32
    %c0_i32_40 = arith.constant 0 : i32
    %81 = arith.cmpi ne, %80, %c0_i32_40 : i32
    scf.if %81 {
      %c0_41 = arith.constant 0 : index
      %c0_42 = arith.constant 0 : index
      %82 = vector.load %arg8[%c0_41, %c0_42] : memref<32x8xf32, #tpu.memory_space<vmem>>, vector<32x8xf32>
      %cst_43 = arith.constant dense<0.000000e+00> : vector<8x8xf32>
      %83 = tpu.matmul %76, %82, %cst_43 {dimension_numbers = #tpu.dot_dimension_numbers<[1], [0], [0], [1], [0, 0, 1, 1], [], []>} : vector<8x32xf32>, vector<32x8xf32>, vector<8x8xf32> -> vector<8x8xf32>
      %c0_44 = arith.constant 0 : index
      %c0_45 = arith.constant 0 : index
      %84 = vector.load %arg9[%c0_44, %c0_45] : memref<1x8xf32, #tpu.memory_space<vmem>>, vector<1x8xf32>
      %85 = vector.broadcast %84 : vector<1x8xf32> to vector<8x8xf32>
      %86 = arith.addf %83, %85 : vector<8x8xf32>
      %c0_46 = arith.constant 0 : index
      %c0_47 = arith.constant 0 : index
      %87 = vector.load %arg10[%c0_46, %c0_47] : memref<8x8xf32, #tpu.memory_space<vmem>>, vector<8x8xf32>
      tpu.vector_store %arg10[%c0_46, %c0_47], %86 {strides = array<i32>} : memref<8x8xf32, #tpu.memory_space<vmem>>, vector<8x8xf32>,
    } else {
    }
    return
  }
  func.func @transform_0(%arg0: i32) -> (i32, i32, i32) {
    %c0_i32 = arith.constant 0 : i32
    %c0_i32_0 = arith.constant 0 : i32
    %c0_i32_1 = arith.constant 0 : i32
    return %arg0, %c0_i32, %c0_i32_0 : i32, i32, i32
  }
  func.func @transform_1(%arg0: i32) -> (i32, i32) {
    %c0_i32 = arith.constant 0 : i32
    %c0_i32_0 = arith.constant 0 : i32
    %c0_i32_1 = arith.constant 0 : i32
    return %c0_i32, %c0_i32_0 : i32, i32
  }
  func.func @transform_2(%arg0: i32) -> (i32, i32) {
    %c0_i32 = arith.constant 0 : i32
    %c0_i32_0 = arith.constant 0 : i32
    %c0_i32_1 = arith.constant 0 : i32
    return %c0_i32, %c0_i32_0 : i32, i32
  }
  func.func @transform_3(%arg0: i32) -> (i32, i32) {
    %c0_i32 = arith.constant 0 : i32
    %c0_i32_0 = arith.constant 0 : i32
    %c0_i32_1 = arith.constant 0 : i32
    return %c0_i32, %c0_i32_0 : i32, i32
  }
  func.func @transform_4(%arg0: i32) -> (i32, i32) {
    %c0_i32 = arith.constant 0 : i32
    %c0_i32_0 = arith.constant 0 : i32
    %c0_i32_1 = arith.constant 0 : i32
    return %c0_i32, %c0_i32_0 : i32, i32
  }
  func.func @transform_5(%arg0: i32) -> (i32, i32) {
    %c0_i32 = arith.constant 0 : i32
    %c0_i32_0 = arith.constant 0 : i32
    %c0_i32_1 = arith.constant 0 : i32
    return %c0_i32, %c0_i32_0 : i32, i32
  }
  func.func @transform_6(%arg0: i32) -> (i32, i32) {
    %c0_i32 = arith.constant 0 : i32
    %c0_i32_0 = arith.constant 0 : i32
    %c0_i32_1 = arith.constant 0 : i32
    return %c0_i32, %c0_i32_0 : i32, i32
  }
  func.func @transform_7(%arg0: i32) -> (i32, i32) {
    %c0_i32 = arith.constant 0 : i32
    %c0_i32_0 = arith.constant 0 : i32
    %c0_i32_1 = arith.constant 0 : i32
    return %c0_i32, %c0_i32_0 : i32, i32
  }
  func.func @transform_8(%arg0: i32) -> (i32, i32) {
    %c0_i32 = arith.constant 0 : i32
    %c0_i32_0 = arith.constant 0 : i32
    %c0_i32_1 = arith.constant 0 : i32
    return %c0_i32, %c0_i32_0 : i32, i32
  }
  func.func @transform_9(%arg0: i32) -> (i32, i32) {
    %c0_i32 = arith.constant 0 : i32
    %c0_i32_0 = arith.constant 0 : i32
    %c0_i32_1 = arith.constant 0 : i32
    return %c0_i32, %c0_i32_0 : i32, i32
  }
}

</mosaic_0001>

<llo_original>
// kernel: tpu_custom_call.1
$region0: #{tpu_custom_call.1}
  #allocation0 [shape = 'u32[]', space=smem, size = 0x4, offset = 0x4, fixed_abs, tag = 'smem constant byte address 0x4 - core index']
  #allocation1 [shape = 'u32[144,128]{1,0:T(1,128)}', space=vmem, size = 0x12000, scoped, tag = 'internal scratch']
  #allocation2 [shape = 'f32[8,32]{1,0:T(8,128)}', space=vmem, size = 0x1000, scoped, tag = 'scratch operand']
  #allocation3 [shape = 'f32[8,32]{1,0:T(8,128)}', space=vmem, size = 0x1000, scoped, tag = 'scratch operand']
  #allocation4 [shape = 'f32[8,32]{1,0:T(8,128)}', space=vmem, size = 0x1000, scoped, tag = 'scratch operand']
  #allocation5 [shape = 'f32[8,32]{1,0:T(8,128)}', space=vmem, size = 0x1000, scoped, tag = 'scratch operand']
  %s0 = inlined_call_operand.hbm [shape: f32[8,8,128], index: 0, kind: input, shape index: {}]
  %s1 = inlined_call_operand.hbm [shape: f32[32,128], index: 1, kind: input, shape index: {}]
  %s2 = inlined_call_operand.hbm [shape: f32[32,32], index: 2, kind: input, shape index: {}]
  %s3 = inlined_call_operand.hbm [shape: f32[1,32], index: 3, kind: input, shape index: {}]
  %s4 = inlined_call_operand.hbm [shape: f32[32,128], index: 4, kind: input, shape index: {}]
  %s5 = inlined_call_operand.hbm [shape: f32[32,128], index: 5, kind: input, shape index: {}]
  %s6 = inlined_call_operand.hbm [shape: f32[1,128], index: 6, kind: input, shape index: {}]
  %s7 = inlined_call_operand.hbm [shape: f32[32,8], index: 7, kind: input, shape index: {}]
  %s8 = inlined_call_operand.hbm [shape: f32[1,8], index: 8, kind: input, shape index: {}]
  %s9 = inlined_call_operand.hbm [shape: f32[8,8], index: 9, kind: output, shape index: {}]
  %s10 = sld [smem:[#allocation0]]
  $region113: #{tpu_custom_call.1} parent=0
    _
  %s12 = ssub.s32 1, %s10
  %s13 = scalar_select 0, %s12, %s10
  $region1: #{tpu_custom_call.1} parent=0
    #allocation6 [shape = 'u8[8192]{0}', space=vmem, size = 0x2000, scoped, tag = 'input window, operand 0']
    #allocation7 [shape = 's32[2]{0}', space=sflag, size = 0x8, scoped, tag = 'scoped memory for tpu_custom_call.1']
    #allocation8 [shape = 's32[2]{0}', space=sflag, size = 0x8, scoped, tag = 'scoped memory for tpu_custom_call.1']
    #allocation9 [shape = 'u8[16384]{0}', space=vmem, size = 0x4000, scoped, tag = 'input window, operand 1, single buffered']
    #allocation10 [shape = 's32[1]{0}', space=sflag, size = 0x4, scoped, tag = 'scoped memory for tpu_custom_call.1']
    #allocation11 [shape = 'u8[16384]{0}', space=vmem, size = 0x4000, scoped, tag = 'input window, operand 2, single buffered']
    #allocation12 [shape = 'u8[512]{0}', space=vmem, size = 0x400, scoped, tag = 'input window, operand 3, single buffered']
    #allocation13 [shape = 's32[1]{0}', space=sflag, size = 0x4, scoped, tag = 'scoped memory for tpu_custom_call.1']
    #allocation14 [shape = 'u8[16384]{0}', space=vmem, size = 0x4000, scoped, tag = 'input window, operand 4, single buffered']
    #allocation15 [shape = 'u8[16384]{0}', space=vmem, size = 0x4000, scoped, tag = 'input window, operand 5, single buffered']
    #allocation16 [shape = 's32[1]{0}', space=sflag, size = 0x4, scoped, tag = 'scoped memory for tpu_custom_call.1']
    #allocation17 [shape = 'u8[512]{0}', space=vmem, size = 0x400, scoped, tag = 'input window, operand 6, single buffered']
    #allocation18 [shape = 'u8[16384]{0}', space=vmem, size = 0x4000, scoped, tag = 'input window, operand 7, single buffered']
    #allocation19 [shape = 's32[1]{0}', space=sflag, size = 0x4, scoped, tag = 'scoped memory for tpu_custom_call.1']
    #allocation20 [shape = 'u8[512]{0}', space=vmem, size = 0x400, scoped, tag = 'input window, operand 8, single buffered']
    #allocation21 [shape = 'u8[4096]{0}', space=vmem, size = 0x1000, scoped, tag = 'output window, operand 0, single buffered']
    %14 = vsyncpa [#allocation7], 0
    %s15 = scalar_lea.sflag [#allocation7], 1
    %16 = vsyncpa %s15, 0
    %17 = vsyncpa [#allocation10], 0
    %18 = vsyncpa [#allocation13], 0
    %19 = vsyncpa [#allocation16], 0
    %20 = vsyncpa [#allocation19], 0
    %21 = vsyncpa [#allocation8], 0
    loop: start=0, step=1, limit=10
    $region2: #{tpu_custom_call.1} parent=1 // loop_pre_header
      _
    $region3: #{tpu_custom_call.1} parent=1 // loop_header
      %s23 = sphi 0, %s27
      %p24 = scmp.ge.s32.totalorder %s23, 10
      %s33 = sphi 0, %s35
      %s36 = sphi 0, %s33
      %s37 = sphi 0, %s36
      %s53 = sphi 0, %s37
      %s57 = sphi 0, %s57
      %s59 = sphi 0, %s57
      %s60 = sphi 0, %s59
      %s74 = sphi 0, %s60
      %s78 = sphi 0, %s78
      %s80 = sphi 0, %s78
      %s81 = sphi 0, %s80
      %s95 = sphi 0, %s81
      %s99 = sphi 0, %s99
      %s101 = sphi 0, %s99
      %s102 = sphi 0, %s101
      %s116 = sphi 0, %s102
      %s120 = sphi 0, %s120
      %s122 = sphi 0, %s120
      %s123 = sphi 0, %s122
      %s137 = sphi 0, %s123
      %s141 = sphi 0, %s141
      %s143 = sphi 0, %s141
      %s144 = sphi 0, %s143
      %s158 = sphi 0, %s144
      %s162 = sphi 0, %s162
      %s164 = sphi 0, %s162
      %s165 = sphi 0, %s164
      %s179 = sphi 0, %s165
      %s183 = sphi 0, %s183
      %s185 = sphi 0, %s183
      %s186 = sphi 0, %s185
      %s200 = sphi 0, %s186
      %s204 = sphi 0, %s204
      %s206 = sphi 0, %s204
      %s207 = sphi 0, %s206
      %s221 = sphi 0, %s207
      %s225 = sphi 0, %s225
      %s227 = sphi 0, %s225
      %s228 = sphi 0, %s227
      %s242 = sphi 0, %s228
    $region4: #{tpu_custom_call.1} parent=1 // loop_header_branch
      %26 = sbr.rel (%p24) target = $region8
    $region5: #{tpu_custom_call.1} parent=1 // loop_body
      %s28 = ssub.s32 %s23, 1
      %s29 = ssub.s32 %s23, 2
      %s30 = sadd.s32 %s23, 1
      %s31 = ssub.s32 %s23, %s30
      %p32 = scmp.eq.s32.totalorder %s31, 0
      %s34 = sadd.s32 %s33, 1
      %s35 = scalar_select %p32, %s33, %s34
      %p38 = pneg %p32
      %p39 = scmp.eq.s32.totalorder %s23, 7
      %p40 = por %p38, %p39
      %p41 = scmp.ne.s32.totalorder %s33, %s36
      %p42 = scmp.eq.s32.totalorder %s23, 0
      %p43 = por %p41, %p42
      %p44 = scmp.ne.s32.totalorder %s33, %s36
      %p45 = scmp.eq.s32.totalorder %s28, 7
      %p46 = por %p44, %p45
      %p47 = scmp.ne.s32.totalorder %s36, %s37
      %p48 = scmp.eq.s32.totalorder %s28, 0
      %p49 = por %p47, %p48
      %p50 = scmp.ne.s32.totalorder %s36, %s37
      %p51 = scmp.eq.s32.totalorder %s29, 7
      %p52 = por %p50, %p51
      %p54 = scmp.ne.s32.totalorder %s37, %s53
      %p55 = scmp.eq.s32.totalorder %s29, 0
      %p56 = por %p54, %p55
      %s58 = sadd.s32 %s57, 1
      %p61 = scmp.eq.s32.totalorder %s23, 7
      %p62 = scmp.ne.s32.totalorder %s57, %s59
      %p63 = scmp.eq.s32.totalorder %s23, 0
      %p64 = por %p62, %p63
      %p65 = scmp.ne.s32.totalorder %s57, %s59
      %p66 = scmp.eq.s32.totalorder %s28, 7
      %p67 = por %p65, %p66
      %p68 = scmp.ne.s32.totalorder %s59, %s60
      %p69 = scmp.eq.s32.totalorder %s28, 0
      %p70 = por %p68, %p69
      %p71 = scmp.ne.s32.totalorder %s59, %s60
      %p72 = scmp.eq.s32.totalorder %s29, 7
      %p73 = por %p71, %p72
      %p75 = scmp.ne.s32.totalorder %s60, %s74
      %p76 = scmp.eq.s32.totalorder %s29, 0
      %p77 = por %p75, %p76
      %s79 = sadd.s32 %s78, 1
      %p82 = scmp.eq.s32.totalorder %s23, 7
      %p83 = scmp.ne.s32.totalorder %s78, %s80
      %p84 = scmp.eq.s32.totalorder %s23, 0
      %p85 = por %p83, %p84
      %p86 = scmp.ne.s32.totalorder %s78, %s80
      %p87 = scmp.eq.s32.totalorder %s28, 7
      %p88 = por %p86, %p87
      %p89 = scmp.ne.s32.totalorder %s80, %s81
      %p90 = scmp.eq.s32.totalorder %s28, 0
      %p91 = por %p89, %p90
      %p92 = scmp.ne.s32.totalorder %s80, %s81
      %p93 = scmp.eq.s32.totalorder %s29, 7
      %p94 = por %p92, %p93
      %p96 = scmp.ne.s32.totalorder %s81, %s95
      %p97 = scmp.eq.s32.totalorder %s29, 0
      %p98 = por %p96, %p97
      %s100 = sadd.s32 %s99, 1
      %p103 = scmp.eq.s32.totalorder %s23, 7
      %p104 = scmp.ne.s32.totalorder %s99, %s101
      %p105 = scmp.eq.s32.totalorder %s23, 0
      %p106 = por %p104, %p105
      %p107 = scmp.ne.s32.totalorder %s99, %s101
      %p108 = scmp.eq.s32.totalorder %s28, 7
      %p109 = por %p107, %p108
      %p110 = scmp.ne.s32.totalorder %s101, %s102
      %p111 = scmp.eq.s32.totalorder %s28, 0
      %p112 = por %p110, %p111
      %p113 = scmp.ne.s32.totalorder %s101, %s102
      %p114 = scmp.eq.s32.totalorder %s29, 7
      %p115 = por %p113, %p114
      %p117 = scmp.ne.s32.totalorder %s102, %s116
      %p118 = scmp.eq.s32.totalorder %s29, 0
      %p119 = por %p117, %p118
      %s121 = sadd.s32 %s120, 1
      %p124 = scmp.eq.s32.totalorder %s23, 7
      %p125 = scmp.ne.s32.totalorder %s120, %s122
      %p126 = scmp.eq.s32.totalorder %s23, 0
      %p127 = por %p125, %p126
      %p128 = scmp.ne.s32.totalorder %s120, %s122
      %p129 = scmp.eq.s32.totalorder %s28, 7
      %p130 = por %p128, %p129
      %p131 = scmp.ne.s32.totalorder %s122, %s123
      %p132 = scmp.eq.s32.totalorder %s28, 0
      %p133 = por %p131, %p132
      %p134 = scmp.ne.s32.totalorder %s122, %s123
      %p135 = scmp.eq.s32.totalorder %s29, 7
      %p136 = por %p134, %p135
      %p138 = scmp.ne.s32.totalorder %s123, %s137
      %p139 = scmp.eq.s32.totalorder %s29, 0
      %p140 = por %p138, %p139
      %s142 = sadd.s32 %s141, 1
      %p145 = scmp.eq.s32.totalorder %s23, 7
      %p146 = scmp.ne.s32.totalorder %s141, %s143
      %p147 = scmp.eq.s32.totalorder %s23, 0
      %p148 = por %p146, %p147
      %p149 = scmp.ne.s32.totalorder %s141, %s143
      %p150 = scmp.eq.s32.totalorder %s28, 7
      %p151 = por %p149, %p150
      %p152 = scmp.ne.s32.totalorder %s143, %s144
      %p153 = scmp.eq.s32.totalorder %s28, 0
      %p154 = por %p152, %p153
      %p155 = scmp.ne.s32.totalorder %s143, %s144
      %p156 = scmp.eq.s32.totalorder %s29, 7
      %p157 = por %p155, %p156
      %p159 = scmp.ne.s32.totalorder %s144, %s158
      %p160 = scmp.eq.s32.totalorder %s29, 0
      %p161 = por %p159, %p160
      %s163 = sadd.s32 %s162, 1
      %p166 = scmp.eq.s32.totalorder %s23, 7
      %p167 = scmp.ne.s32.totalorder %s162, %s164
      %p168 = scmp.eq.s32.totalorder %s23, 0
      %p169 = por %p167, %p168
      %p170 = scmp.ne.s32.totalorder %s162, %s164
      %p171 = scmp.eq.s32.totalorder %s28, 7
      %p172 = por %p170, %p171
      %p173 = scmp.ne.s32.totalorder %s164, %s165
      %p174 = scmp.eq.s32.totalorder %s28, 0
      %p175 = por %p173, %p174
      %p176 = scmp.ne.s32.totalorder %s164, %s165
      %p177 = scmp.eq.s32.totalorder %s29, 7
      %p178 = por %p176, %p177
      %p180 = scmp.ne.s32.totalorder %s165, %s179
      %p181 = scmp.eq.s32.totalorder %s29, 0
      %p182 = por %p180, %p181
      %s184 = sadd.s32 %s183, 1
      %p187 = scmp.eq.s32.totalorder %s23, 7
      %p188 = scmp.ne.s32.totalorder %s183, %s185
      %p189 = scmp.eq.s32.totalorder %s23, 0
      %p190 = por %p188, %p189
      %p191 = scmp.ne.s32.totalorder %s183, %s185
      %p192 = scmp.eq.s32.totalorder %s28, 7
      %p193 = por %p191, %p192
      %p194 = scmp.ne.s32.totalorder %s185, %s186
      %p195 = scmp.eq.s32.totalorder %s28, 0
      %p196 = por %p194, %p195
      %p197 = scmp.ne.s32.totalorder %s185, %s186
      %p198 = scmp.eq.s32.totalorder %s29, 7
      %p199 = por %p197, %p198
      %p201 = scmp.ne.s32.totalorder %s186, %s200
      %p202 = scmp.eq.s32.totalorder %s29, 0
      %p203 = por %p201, %p202
      %s205 = sadd.s32 %s204, 1
      %p208 = scmp.eq.s32.totalorder %s23, 7
      %p209 = scmp.ne.s32.totalorder %s204, %s206
      %p210 = scmp.eq.s32.totalorder %s23, 0
      %p211 = por %p209, %p210
      %p212 = scmp.ne.s32.totalorder %s204, %s206
      %p213 = scmp.eq.s32.totalorder %s28, 7
      %p214 = por %p212, %p213
      %p215 = scmp.ne.s32.totalorder %s206, %s207
      %p216 = scmp.eq.s32.totalorder %s28, 0
      %p217 = por %p215, %p216
      %p218 = scmp.ne.s32.totalorder %s206, %s207
      %p219 = scmp.eq.s32.totalorder %s29, 7
      %p220 = por %p218, %p219
      %p222 = scmp.ne.s32.totalorder %s207, %s221
      %p223 = scmp.eq.s32.totalorder %s29, 0
      %p224 = por %p222, %p223
      %s226 = sadd.s32 %s225, 1
      %p229 = scmp.eq.s32.totalorder %s23, 7
      %p230 = scmp.ne.s32.totalorder %s225, %s227
      %p231 = scmp.eq.s32.totalorder %s23, 0
      %p232 = por %p230, %p231
      %p233 = scmp.ne.s32.totalorder %s225, %s227
      %p234 = scmp.eq.s32.totalorder %s28, 7
      %p235 = por %p233, %p234
      %p236 = scmp.ne.s32.totalorder %s227, %s228
      %p237 = scmp.eq.s32.totalorder %s28, 0
      %p238 = por %p236, %p237
      %p239 = scmp.ne.s32.totalorder %s227, %s228
      %p240 = scmp.eq.s32.totalorder %s29, 7
      %p241 = por %p239, %p240
      %p243 = scmp.ne.s32.totalorder %s228, %s242
      %p244 = scmp.eq.s32.totalorder %s29, 0
      %p245 = por %p243, %p244
      %p246 = scmp.le.s32.totalorder 1, %s23
      %p247 = scmp.lt.s32.totalorder %s23, 9
      %p248 = pnand %p246, %p247
      %p249 = pneg %p248
      // Predicated region
      $region9: #{tpu_custom_call.1} parent=5 // pred_check
        _
      $region10: #{tpu_custom_call.1} parent=5 // pred_check_branch
        %251 = sbr.rel (%p248) target = $region12
      $region11: #{tpu_custom_call.1} parent=5 // pred_region
        %s252 = ssub.s32 %s23, 1
        // Predicated region
        $region13: #{tpu_custom_call.1} parent=11 // pred_check
          %p253 = pneg %p70
        $region14: #{tpu_custom_call.1} parent=11 // pred_check_branch
          %255 = sbr.rel (%p253) target = $region16
        $region15: #{tpu_custom_call.1} parent=11 // pred_region
          %s257 = ssub.s32 512, 512
          %258 = vsyncadd [#allocation10], %s257
          %s259 = sshll.u32 [#allocation9], 4
          %s260 = int_to_ptr.vmem [resolvable:$true] %s259
          %265 = dma.hbm_to_vmem [thread:$0]  %s1, 512, %s260, [#allocation10], 128, 128, 8
        $region16: #{tpu_custom_call.1} parent=11 // pred_fallthru
          _
        // Predicated region
        $region17: #{tpu_custom_call.1} parent=11 // pred_check
          %p266 = pneg %p91
        $region18: #{tpu_custom_call.1} parent=11 // pred_check_branch
          %268 = sbr.rel (%p266) target = $region20
        $region19: #{tpu_custom_call.1} parent=11 // pred_region
          %s270 = ssub.s32 512, 512
          %271 = vsyncadd [#allocation10], %s270
          %s272 = sshll.u32 [#allocation11], 4
          %s273 = int_to_ptr.vmem [resolvable:$true] %s272
          %278 = dma.hbm_to_vmem [thread:$0]  %s2, 512, %s273, [#allocation10], 128, 128, 8
        $region20: #{tpu_custom_call.1} parent=11 // pred_fallthru
          _
        // Predicated region
        $region21: #{tpu_custom_call.1} parent=11 // pred_check
          %p279 = pneg %p112
        $region22: #{tpu_custom_call.1} parent=11 // pred_check_branch
          %281 = sbr.rel (%p279) target = $region24
        $region23: #{tpu_custom_call.1} parent=11 // pred_region
          %s283 = ssub.s32 16, 16
          %284 = vsyncadd [#allocation13], %s283
          %s286 = sshll.u32 [#allocation12], 4
          %s287 = int_to_ptr.vmem [resolvable:$true] %s286
          %289 = dma.hbm_to_vmem [thread:$0]  %s3, 16, %s287, [#allocation13]
        $region24: #{tpu_custom_call.1} parent=11 // pred_fallthru
          _
        // Predicated region
        $region25: #{tpu_custom_call.1} parent=11 // pred_check
          %p290 = pneg %p133
        $region26: #{tpu_custom_call.1} parent=11 // pred_check_branch
          %292 = sbr.rel (%p290) target = $region28
        $region27: #{tpu_custom_call.1} parent=11 // pred_region
          %s294 = ssub.s32 512, 512
          %295 = vsyncadd [#allocation13], %s294
          %s296 = sshll.u32 [#allocation14], 4
          %s297 = int_to_ptr.vmem [resolvable:$true] %s296
          %302 = dma.hbm_to_vmem [thread:$0]  %s4, 512, %s297, [#allocation13], 128, 128, 8
        $region28: #{tpu_custom_call.1} parent=11 // pred_fallthru
          _
        // Predicated region
        $region29: #{tpu_custom_call.1} parent=11 // pred_check
          %p303 = pneg %p154
        $region30: #{tpu_custom_call.1} parent=11 // pred_check_branch
          %305 = sbr.rel (%p303) target = $region32
        $region31: #{tpu_custom_call.1} parent=11 // pred_region
          %s307 = ssub.s32 512, 512
          %308 = vsyncadd [#allocation16], %s307
          %s309 = sshll.u32 [#allocation15], 4
          %s310 = int_to_ptr.vmem [resolvable:$true] %s309
          %315 = dma.hbm_to_vmem [thread:$0]  %s5, 512, %s310, [#allocation16], 128, 128, 8
        $region32: #{tpu_custom_call.1} parent=11 // pred_fallthru
          _
        // Predicated region
        $region33: #{tpu_custom_call.1} parent=11 // pred_check
          %p316 = pneg %p175
        $region34: #{tpu_custom_call.1} parent=11 // pred_check_branch
          %318 = sbr.rel (%p316) target = $region36
        $region35: #{tpu_custom_call.1} parent=11 // pred_region
          %s320 = ssub.s32 16, 16
          %321 = vsyncadd [#allocation16], %s320
          %s323 = sshll.u32 [#allocation17], 4
          %s324 = int_to_ptr.vmem [resolvable:$true] %s323
          %326 = dma.hbm_to_vmem [thread:$0]  %s6, 16, %s324, [#allocation16]
        $region36: #{tpu_custom_call.1} parent=11 // pred_fallthru
          _
        // Predicated region
        $region37: #{tpu_custom_call.1} parent=11 // pred_check
          %p327 = pneg %p196
        $region38: #{tpu_custom_call.1} parent=11 // pred_check_branch
          %329 = sbr.rel (%p327) target = $region40
        $region39: #{tpu_custom_call.1} parent=11 // pred_region
          %s331 = ssub.s32 512, 512
          %332 = vsyncadd [#allocation19], %s331
          %s333 = sshll.u32 [#allocation18], 4
          %s334 = int_to_ptr.vmem [resolvable:$true] %s333
          %339 = dma.hbm_to_vmem [thread:$0]  %s7, 512, %s334, [#allocation19], 128, 128, 8
        $region40: #{tpu_custom_call.1} parent=11 // pred_fallthru
          _
        // Predicated region
        $region41: #{tpu_custom_call.1} parent=11 // pred_check
          %p340 = pneg %p217
        $region42: #{tpu_custom_call.1} parent=11 // pred_check_branch
          %342 = sbr.rel (%p340) target = $region44
        $region43: #{tpu_custom_call.1} parent=11 // pred_region
          %s344 = ssub.s32 16, 16
          %345 = vsyncadd [#allocation19], %s344
          %s347 = sshll.u32 [#allocation20], 4
          %s348 = int_to_ptr.vmem [resolvable:$true] %s347
          %350 = dma.hbm_to_vmem [thread:$0]  %s8, 16, %s348, [#allocation19]
        $region44: #{tpu_custom_call.1} parent=11 // pred_fallthru
          _
      $region12: #{tpu_custom_call.1} parent=5 // pred_fallthru
        _
      %p351 = scmp.lt.s32.totalorder %s23, 8
      // Predicated region
      $region45: #{tpu_custom_call.1} parent=5 // pred_check
        %p352 = pneg %p351
      $region46: #{tpu_custom_call.1} parent=5 // pred_check_branch
        %354 = sbr.rel (%p352) target = $region48
      $region47: #{tpu_custom_call.1} parent=5 // pred_region
        // Predicated region
        $region49: #{tpu_custom_call.1} parent=47 // pred_check
          %p355 = pneg %p43
        $region50: #{tpu_custom_call.1} parent=47 // pred_check_branch
          %357 = sbr.rel (%p355) target = $region52
        $region51: #{tpu_custom_call.1} parent=47 // pred_region
          %s358 = sand.u32 %s33, 1
          %s359 = scalar_lea.sflag [#allocation7], %s358
          %s360 = sand.u32 %s33, 1
          %s361 = smul.addr %s360, 8
          %s362 = scalar_lea.vmem [#allocation6], %s361
          %s364 = ssub.s32 128, 128
          %365 = vsyncadd %s359, %s364
          %s366 = smul.addr %s23, 128
          %s367 = scalar_lea.hbm %s0, %s366
          %s369 = sshll.u32 %s362, 4
          %s370 = int_to_ptr.vmem [resolvable:$true] %s369
          %372 = dma.hbm_to_vmem [thread:$0]  %s367, 128, %s370, %s359
        $region52: #{tpu_custom_call.1} parent=47 // pred_fallthru
          _
      $region48: #{tpu_custom_call.1} parent=5 // pred_fallthru
        _
      %p373 = scmp.le.s32.totalorder 1, %s23
      %p374 = scmp.lt.s32.totalorder %s23, 9
      %p375 = pnand %p373, %p374
      %p376 = pneg %p375
      // Predicated region
      $region53: #{tpu_custom_call.1} parent=5 // pred_check
        _
      $region54: #{tpu_custom_call.1} parent=5 // pred_check_branch
        %378 = sbr.rel (%p375) target = $region56
      $region55: #{tpu_custom_call.1} parent=5 // pred_region
        %s379 = ssub.s32 %s23, 1
        %s380 = sand.u32 %s36, 1
        %s381 = scalar_lea.sflag [#allocation7], %s380
        %s382 = sand.u32 %s36, 1
        %s383 = smul.addr %s382, 8
        %s384 = scalar_lea.vmem [#allocation6], %s383
        // Predicated region
        $region57: #{tpu_custom_call.1} parent=55 // pred_check
          %p385 = pneg %p49
        $region58: #{tpu_custom_call.1} parent=55 // pred_check_branch
          %387 = sbr.rel (%p385) target = $region60
        $region59: #{tpu_custom_call.1} parent=55 // pred_region
          %388 = dma.done %s381, 128
        $region60: #{tpu_custom_call.1} parent=55 // pred_fallthru
          _
        // Predicated region
        $region61: #{tpu_custom_call.1} parent=55 // pred_check
          %p389 = pneg %p70
        $region62: #{tpu_custom_call.1} parent=55 // pred_check_branch
          %391 = sbr.rel (%p389) target = $region64
        $region63: #{tpu_custom_call.1} parent=55 // pred_region
          %392 = dma.done [#allocation10], 512
        $region64: #{tpu_custom_call.1} parent=55 // pred_fallthru
          _
        // Predicated region
        $region65: #{tpu_custom_call.1} parent=55 // pred_check
          %p393 = pneg %p91
        $region66: #{tpu_custom_call.1} parent=55 // pred_check_branch
          %395 = sbr.rel (%p393) target = $region68
        $region67: #{tpu_custom_call.1} parent=55 // pred_region
          %396 = dma.done [#allocation10], 512
        $region68: #{tpu_custom_call.1} parent=55 // pred_fallthru
          _
        // Predicated region
        $region69: #{tpu_custom_call.1} parent=55 // pred_check
          %p397 = pneg %p112
        $region70: #{tpu_custom_call.1} parent=55 // pred_check_branch
          %399 = sbr.rel (%p397) target = $region72
        $region71: #{tpu_custom_call.1} parent=55 // pred_region
          %400 = dma.done [#allocation13], 16
        $region72: #{tpu_custom_call.1} parent=55 // pred_fallthru
          _
        // Predicated region
        $region73: #{tpu_custom_call.1} parent=55 // pred_check
          %p401 = pneg %p133
        $region74: #{tpu_custom_call.1} parent=55 // pred_check_branch
          %403 = sbr.rel (%p401) target = $region76
        $region75: #{tpu_custom_call.1} parent=55 // pred_region
          %404 = dma.done [#allocation13], 512
        $region76: #{tpu_custom_call.1} parent=55 // pred_fallthru
          _
        // Predicated region
        $region77: #{tpu_custom_call.1} parent=55 // pred_check
          %p405 = pneg %p154
        $region78: #{tpu_custom_call.1} parent=55 // pred_check_branch
          %407 = sbr.rel (%p405) target = $region80
        $region79: #{tpu_custom_call.1} parent=55 // pred_region
          %408 = dma.done [#allocation16], 512
        $region80: #{tpu_custom_call.1} parent=55 // pred_fallthru
          _
        // Predicated region
        $region81: #{tpu_custom_call.1} parent=55 // pred_check
          %p409 = pneg %p175
        $region82: #{tpu_custom_call.1} parent=55 // pred_check_branch
          %411 = sbr.rel (%p409) target = $region84
        $region83: #{tpu_custom_call.1} parent=55 // pred_region
          %412 = dma.done [#allocation16], 16
        $region84: #{tpu_custom_call.1} parent=55 // pred_fallthru
          _
        // Predicated region
        $region85: #{tpu_custom_call.1} parent=55 // pred_check
          %p413 = pneg %p196
        $region86: #{tpu_custom_call.1} parent=55 // pred_check_branch
          %415 = sbr.rel (%p413) target = $region88
        $region87: #{tpu_custom_call.1} parent=55 // pred_region
          %416 = dma.done [#allocation19], 512
        $region88: #{tpu_custom_call.1} parent=55 // pred_fallthru
          _
        // Predicated region
        $region89: #{tpu_custom_call.1} parent=55 // pred_check
          %p417 = pneg %p217
        $region90: #{tpu_custom_call.1} parent=55 // pred_check_branch
          %419 = sbr.rel (%p417) target = $region92
        $region91: #{tpu_custom_call.1} parent=55 // pred_region
          %420 = dma.done [#allocation19], 16
        $region92: #{tpu_custom_call.1} parent=55 // pred_fallthru
          _
        %s421 = sand.u32 %s36, 1
        %s422 = scalar_lea.sflag [#allocation7], %s421
        %s423 = sand.u32 %s36, 1
        %s424 = smul.addr %s423, 8
        %s425 = scalar_lea.vmem [#allocation6], %s424
        %p426 = pneg %p49
        %p427 = pneg %p46
        %p428 = pneg %p70
        %p429 = pneg %p67
        %p430 = pneg %p91
        %p431 = pneg %p88
        %p432 = pneg %p112
        %p433 = pneg %p109
        %p434 = pneg %p133
        %p435 = pneg %p130
        %p436 = pneg %p154
        %p437 = pneg %p151
        %p438 = pneg %p175
        %p439 = pneg %p172
        %p440 = pneg %p196
        %p441 = pneg %p193
        %p442 = pneg %p217
        %p443 = pneg %p214
        %p444 = pneg %p238
        %p445 = pneg %p235
        %p446 = scmp.eq.s32.totalorder %s28, 0
        // Predicated region
        $region93: #{tpu_custom_call.1} parent=55 // pred_check
          %p447 = pneg %p446
        $region94: #{tpu_custom_call.1} parent=55 // pred_check_branch
          %449 = sbr.rel (%p447) target = $region96
        $region95: #{tpu_custom_call.1} parent=55 // pred_region
          %vm450 = vcmask 261120
          %451 = vst.msk [vmem:[#allocation2] sm:$0xff] %vm450, 0.0
          %452 = vst.msk [vmem:[#allocation3] sm:$0xff] %vm450, 0.0
          %453 = vst.msk [vmem:[#allocation4] sm:$0xff] %vm450, 0.0
          %454 = vst.msk [vmem:[#allocation5] sm:$0xff] %vm450, 0.0
        $region96: #{tpu_custom_call.1} parent=55 // pred_fallthru
          _
        %v455 = vld [vmem:[#allocation2] sm:$0xff]
        %v456 = vld [vmem:[#allocation3] sm:$0xff]
        %v457 = vld [vmem:[%s384] sm:$0xff]
        %v458 = vld [vmem:[#allocation9] sm:$0xff]
        %v459 = vld [vmem:[#allocation9 + $0x8] sm:$0xff]
        %v460 = vld [vmem:[#allocation9 + $0x10] sm:$0xff]
        %v461 = vld [vmem:[#allocation9 + $0x18] sm:$0xff]
        %vm462 = vcmask 261120
        %v464 = vsel %vm462, %v455, 0
        %466 = vmatprep.subr.mxu0 0.0
        %467 = vmatpush1.msra.mxu0 %v458
        %468 = vmatprep.subr.mxu0 0.0
        %469 = vmatpush1.msra.mxu0 %v459
        %470 = vmatprep.subr.mxu0 0.0
        %471 = vmatpush1.msra.mxu0 %v460
        %472 = vmatprep.subr.mxu0 0.0
        %473 = vmatpush1.msra.mxu0 %v461
        %474 = vmatprep.subr.mxu0 0.0
        %475 = vmatpush1.msra.mxu0 0.0
        %476 = vmatprep.subr.mxu0 0.0
        %477 = vmatpush1.msra.mxu0 0.0
        %478 = vmatprep.subr.mxu0 0.0
        %479 = vmatpush1.msra.mxu0 0.0
        %480 = vmatprep.subr.mxu0 0.0
        %481 = vmatpush1.msra.mxu0 0.0
        %482 = vmatprep.subr.mxu0 0.0
        %483 = vmatpush1.msra.mxu0 0.0
        %484 = vmatprep.subr.mxu0 0.0
        %485 = vmatpush1.msra.mxu0 0.0
        %486 = vmatprep.subr.mxu0 0.0
        %487 = vmatpush1.msra.mxu0 0.0
        %488 = vmatprep.subr.mxu0 0.0
        %489 = vmatpush1.msra.mxu0 0.0
        %490 = vmatprep.subr.mxu0 0.0
        %491 = vmatpush1.msra.mxu0 0.0
        %492 = vmatprep.subr.mxu0 0.0
        %493 = vmatpush1.msra.mxu0 0.0
        %494 = vmatprep.subr.mxu0 0.0
        %495 = vmatpush1.msra.mxu0 0.0
        %496 = vmatprep.subr.mxu0 0.0
        %497 = vmatpush1.msra.mxu0 0.0
        %498 = vmatprep.subr.mxu0 0.0
        %499 = vmatpush1.msra.mxu0 0.0
        %500 = vmatprep.subr.mxu0 0.0
        %501 = vmatpush1.msra.mxu0 0.0
        %502 = vmatprep.subr.mxu0 0.0
        %503 = vmatpush1.msra.mxu0 0.0
        %504 = vmatprep.subr.mxu0 0.0
        %505 = vmatpush1.msra.mxu0 0.0
        %506 = vmatprep.subr.mxu0 0.0
        %507 = vmatpush1.msra.mxu0 0.0
        %508 = vmatprep.subr.mxu0 0.0
        %509 = vmatpush1.msra.mxu0 0.0
        %510 = vmatprep.subr.mxu0 0.0
        %511 = vmatpush1.msra.mxu0 0.0
        %512 = vmatprep.subr.mxu0 0.0
        %513 = vmatpush1.msra.mxu0 0.0
        %514 = vmatprep.subr.mxu0 0.0
        %515 = vmatpush1.msra.mxu0 0.0
        %516 = vmatprep.subr.mxu0 0.0
        %517 = vmatpush1.msra.mxu0 0.0
        %518 = vmatprep.subr.mxu0 0.0
        %519 = vmatpush1.msra.mxu0 0.0
        %520 = vmatprep.subr.mxu0 0.0
        %521 = vmatpush1.msra.mxu0 0.0
        %522 = vmatprep.subr.mxu0 0.0
        %523 = vmatpush1.msra.mxu0 0.0
        %524 = vmatprep.subr.mxu0 0.0
        %525 = vmatpush1.msra.mxu0 0.0
        %526 = vmatprep.subr.mxu0 0.0
        %527 = vmatpush1.msra.mxu0 0.0
        %528 = vmatprep.subr.mxu0 0.0
        %529 = vmatpush1.msra.mxu0 0.0
        %530 = vmatprep.mubr.f32.mxu0 0.0
        %531 = vmatmul.mubr.f32.gmra.mrb[0].mxu0 %v464
        %v532 = vpop.f32.mrb[0].mxu0
        %v533 = vadd.f32 0.0, %v532
        %v534 = vpop.f32.mrb[0].mxu0
        %535 = vdwg.mxu0
        %v536 = vadd.f32 %v457, %v533
        %v537 = vxor.u32 %v536, 2147483648
        %v538 = vmul.f32 %v537, 1.442695
        %v539 = vpow.pop %v538
        %v540 = vadd.f32 %v539, 1.0
        %v541 = vrcp.pop %v540
        %v542 = vmul.f32 1.0, %v541
        %v543 = vtanh.pop %v536
        %545 = vrot.lane.b32.xlu0 %v456, 32
        %v546 = vpop.permute.xlu0 %545
        %v548 = vmul.f32 %v542, %v546
        %550 = vrot.lane.b32.xlu0 %v543, 32
        %v551 = vpop.permute.xlu0 %550
        %v553 = vmul.f32 %v542, %v551
        %555 = vrot.lane.b32.xlu0 %v553, 32
        %v556 = vpop.permute.xlu0 %555
        %v558 = vadd.f32 %v548, %v556
        %v559 = vtanh.pop %v558
        %561 = vrot.lane.b32.xlu0 %v559, 32
        %v562 = vpop.permute.xlu0 %561
        %v564 = vmul.f32 %v542, %v562
        %566 = vrot.lane.b32.xlu0 %v564, 64
        %v567 = vpop.permute.xlu0 %566
        %569 = vst.msk [vmem:[#allocation2] sm:$0xff] %vm462, %v567
        %571 = vrot.lane.b32.xlu0 %v558, 96
        %v572 = vpop.permute.xlu0 %571
        %574 = vst.msk [vmem:[#allocation3] sm:$0xff] %vm462, %v572
        %v575 = vld [vmem:[#allocation11] sm:$0xff]
        %v576 = vld [vmem:[#allocation11 + $0x8] sm:$0xff]
        %v577 = vld [vmem:[#allocation11 + $0x10] sm:$0xff]
        %v578 = vld [vmem:[#allocation11 + $0x18] sm:$0xff]
        %v579 = vld [vmem:[#allocation12] sm:$0x1]
        %v581 = vlaneseq
        %v582 = vshrl.u32 %v581, 7
        %v583 = vsub.s32 0, %v582
        %v584 = vrot.slane %v579, %v583
        %v586 = vsel %vm462, %v567, 0
        %588 = vmatprep.subr.mxu0 0.0
        %589 = vmatpush1.msra.mxu0 %v575
        %590 = vmatprep.subr.mxu0 0.0
        %591 = vmatpush1.msra.mxu0 %v576
        %592 = vmatprep.subr.mxu0 0.0
        %593 = vmatpush1.msra.mxu0 %v577
        %594 = vmatprep.subr.mxu0 0.0
        %595 = vmatpush1.msra.mxu0 %v578
        %596 = vmatprep.subr.mxu0 0.0
        %597 = vmatpush1.msra.mxu0 0.0
        %598 = vmatprep.subr.mxu0 0.0
        %599 = vmatpush1.msra.mxu0 0.0
        %600 = vmatprep.subr.mxu0 0.0
        %601 = vmatpush1.msra.mxu0 0.0
        %602 = vmatprep.subr.mxu0 0.0
        %603 = vmatpush1.msra.mxu0 0.0
        %604 = vmatprep.subr.mxu0 0.0
        %605 = vmatpush1.msra.mxu0 0.0
        %606 = vmatprep.subr.mxu0 0.0
        %607 = vmatpush1.msra.mxu0 0.0
        %608 = vmatprep.subr.mxu0 0.0
        %609 = vmatpush1.msra.mxu0 0.0
        %610 = vmatprep.subr.mxu0 0.0
        %611 = vmatpush1.msra.mxu0 0.0
        %612 = vmatprep.subr.mxu0 0.0
        %613 = vmatpush1.msra.mxu0 0.0
        %614 = vmatprep.subr.mxu0 0.0
        %615 = vmatpush1.msra.mxu0 0.0
        %616 = vmatprep.subr.mxu0 0.0
        %617 = vmatpush1.msra.mxu0 0.0
        %618 = vmatprep.subr.mxu0 0.0
        %619 = vmatpush1.msra.mxu0 0.0
        %620 = vmatprep.subr.mxu0 0.0
        %621 = vmatpush1.msra.mxu0 0.0
        %622 = vmatprep.subr.mxu0 0.0
        %623 = vmatpush1.msra.mxu0 0.0
        %624 = vmatprep.subr.mxu0 0.0
        %625 = vmatpush1.msra.mxu0 0.0
        %626 = vmatprep.subr.mxu0 0.0
        %627 = vmatpush1.msra.mxu0 0.0
        %628 = vmatprep.subr.mxu0 0.0
        %629 = vmatpush1.msra.mxu0 0.0
        %630 = vmatprep.subr.mxu0 0.0
        %631 = vmatpush1.msra.mxu0 0.0
        %632 = vmatprep.subr.mxu0 0.0
        %633 = vmatpush1.msra.mxu0 0.0
        %634 = vmatprep.subr.mxu0 0.0
        %635 = vmatpush1.msra.mxu0 0.0
        %636 = vmatprep.subr.mxu0 0.0
        %637 = vmatpush1.msra.mxu0 0.0
        %638 = vmatprep.subr.mxu0 0.0
        %639 = vmatpush1.msra.mxu0 0.0
        %640 = vmatprep.subr.mxu0 0.0
        %641 = vmatpush1.msra.mxu0 0.0
        %642 = vmatprep.subr.mxu0 0.0
        %643 = vmatpush1.msra.mxu0 0.0
        %644 = vmatprep.subr.mxu0 0.0
        %645 = vmatpush1.msra.mxu0 0.0
        %646 = vmatprep.subr.mxu0 0.0
        %647 = vmatpush1.msra.mxu0 0.0
        %648 = vmatprep.subr.mxu0 0.0
        %649 = vmatpush1.msra.mxu0 0.0
        %650 = vmatprep.subr.mxu0 0.0
        %651 = vmatpush1.msra.mxu0 0.0
        %652 = vmatprep.mubr.f32.mxu0 0.0
        %653 = vmatmul.mubr.f32.gmra.mrb[0].mxu0 %v586
        %v654 = vpop.f32.mrb[0].mxu0
        %v655 = vadd.f32 %v584, %v654
        %v656 = vpop.f32.mrb[0].mxu0
        %657 = vdwg.mxu0
        %v658 = vld [vmem:[#allocation4] sm:$0xff]
        %v659 = vld [vmem:[#allocation5] sm:$0xff]
        %v660 = vld [vmem:[#allocation14] sm:$0xff]
        %v661 = vld [vmem:[#allocation14 + $0x8] sm:$0xff]
        %v662 = vld [vmem:[#allocation14 + $0x10] sm:$0xff]
        %v663 = vld [vmem:[#allocation14 + $0x18] sm:$0xff]
        %v664 = vld [vmem:[#allocation15] sm:$0xff]
        %v665 = vld [vmem:[#allocation15 + $0x8] sm:$0xff]
        %v666 = vld [vmem:[#allocation15 + $0x10] sm:$0xff]
        %v667 = vld [vmem:[#allocation15 + $0x18] sm:$0xff]
        %v669 = vsel %vm462, %v658, 0
        %671 = vmatprep.subr.mxu0 0.0
        %672 = vmatpush1.msra.mxu0 %v664
        %673 = vmatprep.subr.mxu0 0.0
        %674 = vmatpush1.msra.mxu0 %v665
        %675 = vmatprep.subr.mxu0 0.0
        %676 = vmatpush1.msra.mxu0 %v666
        %677 = vmatprep.subr.mxu0 0.0
        %678 = vmatpush1.msra.mxu0 %v667
        %679 = vmatprep.subr.mxu0 0.0
        %680 = vmatpush1.msra.mxu0 0.0
        %681 = vmatprep.subr.mxu0 0.0
        %682 = vmatpush1.msra.mxu0 0.0
        %683 = vmatprep.subr.mxu0 0.0
        %684 = vmatpush1.msra.mxu0 0.0
        %685 = vmatprep.subr.mxu0 0.0
        %686 = vmatpush1.msra.mxu0 0.0
        %687 = vmatprep.subr.mxu0 0.0
        %688 = vmatpush1.msra.mxu0 0.0
        %689 = vmatprep.subr.mxu0 0.0
        %690 = vmatpush1.msra.mxu0 0.0
        %691 = vmatprep.subr.mxu0 0.0
        %692 = vmatpush1.msra.mxu0 0.0
        %693 = vmatprep.subr.mxu0 0.0
        %694 = vmatpush1.msra.mxu0 0.0
        %695 = vmatprep.subr.mxu0 0.0
        %696 = vmatpush1.msra.mxu0 0.0
        %697 = vmatprep.subr.mxu0 0.0
        %698 = vmatpush1.msra.mxu0 0.0
        %699 = vmatprep.subr.mxu0 0.0
        %700 = vmatpush1.msra.mxu0 0.0
        %701 = vmatprep.subr.mxu0 0.0
        %702 = vmatpush1.msra.mxu0 0.0
        %703 = vmatprep.subr.mxu0 0.0
        %704 = vmatpush1.msra.mxu0 0.0
        %705 = vmatprep.subr.mxu0 0.0
        %706 = vmatpush1.msra.mxu0 0.0
        %707 = vmatprep.subr.mxu0 0.0
        %708 = vmatpush1.msra.mxu0 0.0
        %709 = vmatprep.subr.mxu0 0.0
        %710 = vmatpush1.msra.mxu0 0.0
        %711 = vmatprep.subr.mxu0 0.0
        %712 = vmatpush1.msra.mxu0 0.0
        %713 = vmatprep.subr.mxu0 0.0
        %714 = vmatpush1.msra.mxu0 0.0
        %715 = vmatprep.subr.mxu0 0.0
        %716 = vmatpush1.msra.mxu0 0.0
        %717 = vmatprep.subr.mxu0 0.0
        %718 = vmatpush1.msra.mxu0 0.0
        %719 = vmatprep.subr.mxu0 0.0
        %720 = vmatpush1.msra.mxu0 0.0
        %721 = vmatprep.subr.mxu0 0.0
        %722 = vmatpush1.msra.mxu0 0.0
        %723 = vmatprep.subr.mxu0 0.0
        %724 = vmatpush1.msra.mxu0 0.0
        %725 = vmatprep.subr.mxu0 0.0
        %726 = vmatpush1.msra.mxu0 0.0
        %727 = vmatprep.subr.mxu0 0.0
        %728 = vmatpush1.msra.mxu0 0.0
        %729 = vmatprep.subr.mxu0 0.0
        %730 = vmatpush1.msra.mxu0 0.0
        %731 = vmatprep.subr.mxu0 0.0
        %732 = vmatpush1.msra.mxu0 0.0
        %733 = vmatprep.subr.mxu0 0.0
        %734 = vmatpush1.msra.mxu0 0.0
        %735 = vmatprep.mubr.f32.mxu0 0.0
        %736 = vmatmul.mubr.f32.gmra.mrb[0].mxu0 %v669
        %v737 = vpop.f32.mrb[0].mxu0
        %v738 = vadd.f32 0.0, %v737
        %v739 = vpop.f32.mrb[0].mxu0
        %740 = vdwg.mxu0
        %v742 = vsel %vm462, %v655, 0
        %744 = vmatprep.subr.mxu0 0.0
        %745 = vmatpush1.msra.mxu0 %v660
        %746 = vmatprep.subr.mxu0 0.0
        %747 = vmatpush1.msra.mxu0 %v661
        %748 = vmatprep.subr.mxu0 0.0
        %749 = vmatpush1.msra.mxu0 %v662
        %750 = vmatprep.subr.mxu0 0.0
        %751 = vmatpush1.msra.mxu0 %v663
        %752 = vmatprep.subr.mxu0 0.0
        %753 = vmatpush1.msra.mxu0 0.0
        %754 = vmatprep.subr.mxu0 0.0
        %755 = vmatpush1.msra.mxu0 0.0
        %756 = vmatprep.subr.mxu0 0.0
        %757 = vmatpush1.msra.mxu0 0.0
        %758 = vmatprep.subr.mxu0 0.0
        %759 = vmatpush1.msra.mxu0 0.0
        %760 = vmatprep.subr.mxu0 0.0
        %761 = vmatpush1.msra.mxu0 0.0
        %762 = vmatprep.subr.mxu0 0.0
        %763 = vmatpush1.msra.mxu0 0.0
        %764 = vmatprep.subr.mxu0 0.0
        %765 = vmatpush1.msra.mxu0 0.0
        %766 = vmatprep.subr.mxu0 0.0
        %767 = vmatpush1.msra.mxu0 0.0
        %768 = vmatprep.subr.mxu0 0.0
        %769 = vmatpush1.msra.mxu0 0.0
        %770 = vmatprep.subr.mxu0 0.0
        %771 = vmatpush1.msra.mxu0 0.0
        %772 = vmatprep.subr.mxu0 0.0
        %773 = vmatpush1.msra.mxu0 0.0
        %774 = vmatprep.subr.mxu0 0.0
        %775 = vmatpush1.msra.mxu0 0.0
        %776 = vmatprep.subr.mxu0 0.0
        %777 = vmatpush1.msra.mxu0 0.0
        %778 = vmatprep.subr.mxu0 0.0
        %779 = vmatpush1.msra.mxu0 0.0
        %780 = vmatprep.subr.mxu0 0.0
        %781 = vmatpush1.msra.mxu0 0.0
        %782 = vmatprep.subr.mxu0 0.0
        %783 = vmatpush1.msra.mxu0 0.0
        %784 = vmatprep.subr.mxu0 0.0
        %785 = vmatpush1.msra.mxu0 0.0
        %786 = vmatprep.subr.mxu0 0.0
        %787 = vmatpush1.msra.mxu0 0.0
        %788 = vmatprep.subr.mxu0 0.0
        %789 = vmatpush1.msra.mxu0 0.0
        %790 = vmatprep.subr.mxu0 0.0
        %791 = vmatpush1.msra.mxu0 0.0
        %792 = vmatprep.subr.mxu0 0.0
        %793 = vmatpush1.msra.mxu0 0.0
        %794 = vmatprep.subr.mxu0 0.0
        %795 = vmatpush1.msra.mxu0 0.0
        %796 = vmatprep.subr.mxu0 0.0
        %797 = vmatpush1.msra.mxu0 0.0
        %798 = vmatprep.subr.mxu0 0.0
        %799 = vmatpush1.msra.mxu0 0.0
        %800 = vmatprep.subr.mxu0 0.0
        %801 = vmatpush1.msra.mxu0 0.0
        %802 = vmatprep.subr.mxu0 0.0
        %803 = vmatpush1.msra.mxu0 0.0
        %804 = vmatprep.subr.mxu0 0.0
        %805 = vmatpush1.msra.mxu0 0.0
        %806 = vmatprep.subr.mxu0 0.0
        %807 = vmatpush1.msra.mxu0 0.0
        %808 = vmatprep.mubr.f32.mxu0 0.0
        %809 = vmatmul.mubr.f32.gmra.mrb[0].mxu0 %v742
        %v810 = vpop.f32.mrb[0].mxu0
        %v811 = vadd.f32 %v738, %v810
        %v812 = vpop.f32.mrb[0].mxu0
        %813 = vdwg.mxu0
        %v814 = vld [vmem:[#allocation17] sm:$0x1]
        %v816 = vlaneseq
        %v817 = vshrl.u32 %v816, 7
        %v818 = vsub.s32 0, %v817
        %v819 = vrot.slane %v814, %v818
        %v821 = vadd.f32 %v811, %v819
        %v822 = vxor.u32 %v821, 2147483648
        %v823 = vmul.f32 %v822, 1.442695
        %v824 = vpow.pop %v823
        %v825 = vadd.f32 %v824, 1.0
        %v826 = vrcp.pop %v825
        %v827 = vmul.f32 1.0, %v826
        %v828 = vtanh.pop %v821
        %830 = vrot.lane.b32.xlu0 %v659, 32
        %v831 = vpop.permute.xlu0 %830
        %v833 = vmul.f32 %v827, %v831
        %835 = vrot.lane.b32.xlu0 %v828, 32
        %v836 = vpop.permute.xlu0 %835
        %v838 = vmul.f32 %v827, %v836
        %840 = vrot.lane.b32.xlu0 %v838, 32
        %v841 = vpop.permute.xlu0 %840
        %v843 = vadd.f32 %v833, %v841
        %v844 = vtanh.pop %v843
        %846 = vrot.lane.b32.xlu0 %v844, 32
        %v847 = vpop.permute.xlu0 %846
        %v849 = vmul.f32 %v827, %v847
        %851 = vrot.lane.b32.xlu0 %v849, 64
        %v852 = vpop.permute.xlu0 %851
        %854 = vst.msk [vmem:[#allocation4] sm:$0xff] %vm462, %v852
        %856 = vrot.lane.b32.xlu0 %v843, 96
        %v857 = vpop.permute.xlu0 %856
        %859 = vst.msk [vmem:[#allocation5] sm:$0xff] %vm462, %v857
        %p860 = scmp.eq.s32.totalorder %s28, 7
        // Predicated region
        $region97: #{tpu_custom_call.1} parent=55 // pred_check
          %p861 = pneg %p860
        $region98: #{tpu_custom_call.1} parent=55 // pred_check_branch
          %863 = sbr.rel (%p861) target = $region100
        $region99: #{tpu_custom_call.1} parent=55 // pred_region
          %v864 = vld [vmem:[#allocation18] sm:$0xff]
          %v865 = vld [vmem:[#allocation18 + $0x8] sm:$0xff]
          %v866 = vld [vmem:[#allocation18 + $0x10] sm:$0xff]
          %v867 = vld [vmem:[#allocation18 + $0x18] sm:$0xff]
          %v868 = vld [vmem:[#allocation20] sm:$0x1]
          %v870 = vlaneseq
          %v871 = vshrl.u32 %v870, 7
          %v872 = vsub.s32 0, %v871
          %v873 = vrot.slane %v868, %v872
          %v875 = vsel %vm462, %v852, 0
          %877 = vmatprep.subr.mxu0 0.0
          %878 = vmatpush1.msra.mxu0 %v864
          %879 = vmatprep.subr.mxu0 0.0
          %880 = vmatpush1.msra.mxu0 %v865
          %881 = vmatprep.subr.mxu0 0.0
          %882 = vmatpush1.msra.mxu0 %v866
          %883 = vmatprep.subr.mxu0 0.0
          %884 = vmatpush1.msra.mxu0 %v867
          %885 = vmatprep.subr.mxu0 0.0
          %886 = vmatpush1.msra.mxu0 0.0
          %887 = vmatprep.subr.mxu0 0.0
          %888 = vmatpush1.msra.mxu0 0.0
          %889 = vmatprep.subr.mxu0 0.0
          %890 = vmatpush1.msra.mxu0 0.0
          %891 = vmatprep.subr.mxu0 0.0
          %892 = vmatpush1.msra.mxu0 0.0
          %893 = vmatprep.subr.mxu0 0.0
          %894 = vmatpush1.msra.mxu0 0.0
          %895 = vmatprep.subr.mxu0 0.0
          %896 = vmatpush1.msra.mxu0 0.0
          %897 = vmatprep.subr.mxu0 0.0
          %898 = vmatpush1.msra.mxu0 0.0
          %899 = vmatprep.subr.mxu0 0.0
          %900 = vmatpush1.msra.mxu0 0.0
          %901 = vmatprep.subr.mxu0 0.0
          %902 = vmatpush1.msra.mxu0 0.0
          %903 = vmatprep.subr.mxu0 0.0
          %904 = vmatpush1.msra.mxu0 0.0
          %905 = vmatprep.subr.mxu0 0.0
          %906 = vmatpush1.msra.mxu0 0.0
          %907 = vmatprep.subr.mxu0 0.0
          %908 = vmatpush1.msra.mxu0 0.0
          %909 = vmatprep.subr.mxu0 0.0
          %910 = vmatpush1.msra.mxu0 0.0
          %911 = vmatprep.subr.mxu0 0.0
          %912 = vmatpush1.msra.mxu0 0.0
          %913 = vmatprep.subr.mxu0 0.0
          %914 = vmatpush1.msra.mxu0 0.0
          %915 = vmatprep.subr.mxu0 0.0
          %916 = vmatpush1.msra.mxu0 0.0
          %917 = vmatprep.subr.mxu0 0.0
          %918 = vmatpush1.msra.mxu0 0.0
          %919 = vmatprep.subr.mxu0 0.0
          %920 = vmatpush1.msra.mxu0 0.0
          %921 = vmatprep.subr.mxu0 0.0
          %922 = vmatpush1.msra.mxu0 0.0
          %923 = vmatprep.subr.mxu0 0.0
          %924 = vmatpush1.msra.mxu0 0.0
          %925 = vmatprep.subr.mxu0 0.0
          %926 = vmatpush1.msra.mxu0 0.0
          %927 = vmatprep.subr.mxu0 0.0
          %928 = vmatpush1.msra.mxu0 0.0
          %929 = vmatprep.subr.mxu0 0.0
          %930 = vmatpush1.msra.mxu0 0.0
          %931 = vmatprep.subr.mxu0 0.0
          %932 = vmatpush1.msra.mxu0 0.0
          %933 = vmatprep.subr.mxu0 0.0
          %934 = vmatpush1.msra.mxu0 0.0
          %935 = vmatprep.subr.mxu0 0.0
          %936 = vmatpush1.msra.mxu0 0.0
          %937 = vmatprep.subr.mxu0 0.0
          %938 = vmatpush1.msra.mxu0 0.0
          %939 = vmatprep.subr.mxu0 0.0
          %940 = vmatpush1.msra.mxu0 0.0
          %941 = vmatprep.mubr.f32.mxu0 0.0
          %942 = vmatmul.mubr.f32.gmra.mrb[0].mxu0 %v875
          %v943 = vpop.f32.mrb[0].mxu0
          %v944 = vadd.f32 %v873, %v943
          %v945 = vpop.f32.mrb[0].mxu0
          %946 = vdwg.mxu0
          %vm947 = vcmask 64512
          %948 = vst.msk [vmem:[#allocation21] sm:$0xff] %vm947, %v944
        $region100: #{tpu_custom_call.1} parent=55 // pred_fallthru
          _
        // Predicated region
        $region101: #{tpu_custom_call.1} parent=55 // pred_check
          %p949 = pneg %p235
        $region102: #{tpu_custom_call.1} parent=55 // pred_check_branch
          %951 = sbr.rel (%p949) target = $region104
        $region103: #{tpu_custom_call.1} parent=55 // pred_region
          %s953 = ssub.s32 128, 128
          %954 = vsyncadd [#allocation8], %s953
          %s956 = sshll.u32 [#allocation21], 4
          %s957 = int_to_ptr.vmem [resolvable:$true] %s956
          %959 = dma.vmem_to_hbm [thread:$0]  %s957, 128, %s9, [#allocation8]
        $region104: #{tpu_custom_call.1} parent=55 // pred_fallthru
          _
        // Predicated region
        $region105: #{tpu_custom_call.1} parent=55 // pred_check
          %p960 = pneg %p235
        $region106: #{tpu_custom_call.1} parent=55 // pred_check_branch
          %962 = sbr.rel (%p960) target = $region108
        $region107: #{tpu_custom_call.1} parent=55 // pred_region
          %963 = dma.done [#allocation8], 128
        $region108: #{tpu_custom_call.1} parent=55 // pred_fallthru
          _
      $region56: #{tpu_custom_call.1} parent=5 // pred_fallthru
        _
      %p964 = scmp.le.s32.totalorder 2, %s23
      // Predicated region
      $region109: #{tpu_custom_call.1} parent=5 // pred_check
        %p965 = pneg %p964
      $region110: #{tpu_custom_call.1} parent=5 // pred_check_branch
        %967 = sbr.rel (%p965) target = $region112
      $region111: #{tpu_custom_call.1} parent=5 // pred_region
        %s968 = ssub.s32 %s23, 2
      $region112: #{tpu_custom_call.1} parent=5 // pred_fallthru
        _
    $region6: #{tpu_custom_call.1} parent=1 // loop_footer
      %s27 = sadd.s32 1, %s23
    $region7: #{tpu_custom_call.1} parent=1 // loop_footer_branch
      %22 = sbr.rel target = $region3
    $region8: #{tpu_custom_call.1} parent=1 // loop_exit
      _
    %969 = vsyncpa [#allocation7], 1
    %s970 = scalar_lea.sflag [#allocation7], 1
    %971 = vsyncpa %s970, 1
    %972 = vsyncpa [#allocation10], 1
    %973 = vsyncpa [#allocation13], 1
    %974 = vsyncpa [#allocation16], 1
    %975 = vsyncpa [#allocation19], 1
    %976 = vsyncpa [#allocation8], 1
    %s977 = scalar_lea.sflag [#allocation8], 1
    %978 = vsyncpa %s977, 1

</llo_original>
